<compile_context>
chip_gen: v7x
topology: tpu7x:2x2x1
jax: 0.10.0
libtpu: 0.0.40
codegen_flags: <defaults>
</compile_context>

<pallas_src>
import jax
import jax.numpy as jnp
from jax.experimental import pallas as pl
from jax.experimental.pallas import tpu as pltpu


def _make_kernel(a_h, b_h, a_w, b_w, compute_dtype):
    a_h, b_h, a_w, b_w = float(a_h), float(b_h), float(a_w), float(b_w)

    def kernel(z_ref, v_ref, u_ref, o_ref):
        z = z_ref[...]                                   # (bn, hw_chunk), input dtype
        zc = z.astype(compute_dtype)
        # Interleave compute and store per channel to shorten live ranges.
        x = zc * (v_ref[...].astype(compute_dtype) * a_h + b_h)
        o_ref[:, 0, :] = x.astype(o_ref.dtype)
        y = zc * (u_ref[...].astype(compute_dtype) * a_w + b_w)
        o_ref[:, 1, :] = y.astype(o_ref.dtype)
        o_ref[:, 2, :] = z

    return kernel


def _pick_tiles(n, hw, itemsize):
    """Pick (bn, hw_chunk) and estimate the per-step VMEM footprint in bytes.

    Per-element VMEM bytes per grid step:
      double-buffered: 3 input blocks + 1 output block (3 sublanes pad to 8),
      plus ~3 f32-sized slabs for the x / y / zf intermediates.
    """
    bytes_per_elem = 2 * (3 + 8) * itemsize + 3 * 4
    budget = 20 * 1024 * 1024            # per-step footprint target (all gens)
    max_elems = max(128, budget // bytes_per_elem)

    pack = max(8, 32 // itemsize)        # sublane pack: f32 -> 8, bf16 -> 16, i8 -> 32

    # Lane-axis chunks: multiples of 128 dividing HW, else the full extent.
    if hw % 128 == 0:
        hw_cands = [c for c in range(128, hw + 1, 128) if hw % c == 0]
    else:
        hw_cands = [hw]

    # Row blocks: divisors of N that are sublane-pack multiples, or the full batch.
    if n <= pack:
        bn_cands = [n]
    else:
        bn_cands = [d for d in range(pack, n + 1, pack) if n % d == 0] or [n]

    best = (min(bn_cands), min(hw_cands))        # smallest legal block as fallback
    best_elems = 0
    for bn in bn_cands:
        for hc in hw_cands:
            e = bn * hc
            if best_elems < e <= max_elems:
                best, best_elems = (bn, hc), e

    bn, hw_chunk = best
    footprint = bn * hw_chunk * bytes_per_elem
    return bn, hw_chunk, footprint


def geometry_feature(z, vnorm, unorm, h, w, ch, cw, fh, fw):
    """z, vnorm, unorm: (N, 1, H, W) arrays; h/w/ch/cw/fh/fw: Python scalars."""
    N, C, H, W = z.shape
    assert C == 1, "GeometryFeature expects single-channel z/vnorm/unorm"
    HW = H * W
    dtype = z.dtype
    itemsize = jnp.dtype(dtype).itemsize

    z2 = z.reshape(N, HW)
    v2 = vnorm.reshape(N, HW)
    u2 = unorm.reshape(N, HW)

    # Fold the scalar algebra once (exact):
    #   z * (0.5*h*(v+1) - ch) / fh  ==  z * (A_h * v + B_h)
    a_h = 0.5 * h / fh
    b_h = (0.5 * h - ch) / fh
    a_w = 0.5 * w / fw
    b_w = (0.5 * w - cw) / fw

    compute_dtype = jnp.float32
    if jnp.dtype(dtype) == jnp.dtype(jnp.bfloat16):
        compute_dtype = jnp.bfloat16     # native bf16 VPU on v6e/v7x

    bn, hw_chunk, footprint = _pick_tiles(N, HW, itemsize)
    grid = (N // bn, HW // hw_chunk)

    # Explicit scoped-VMEM limit: above the actual footprint, above v5e's
    # 16 MiB default, safely under v7x's 64 MiB physical VMEM.
    vmem_limit = int(min(max(footprint + (4 << 20), 16 << 20), 60 << 20))

    out = pl.pallas_call(
        _make_kernel(a_h, b_h, a_w, b_w, compute_dtype),
        out_shape=jax.ShapeDtypeStruct((N, 3, HW), dtype),
        grid=grid,
        in_specs=[
            pl.BlockSpec((bn, hw_chunk), lambda i, j: (i, j)),   # z
            pl.BlockSpec((bn, hw_chunk), lambda i, j: (i, j)),   # vnorm
            pl.BlockSpec((bn, hw_chunk), lambda i, j: (i, j)),   # unorm
        ],
        out_specs=pl.BlockSpec((bn, 3, hw_chunk), lambda i, j: (i, 0, j)),
        compiler_params=pltpu.CompilerParams(
            dimension_semantics=("parallel", "parallel"),
            vmem_limit_bytes=vmem_limit),
        cost_estimate=pl.CostEstimate(
            flops=6 * N * HW,
            transcendentals=0,
            bytes_accessed=6 * N * HW * itemsize),
    )(z2, v2, u2)

    # (N, 3, HW) -> (N, 3, H, W): free metadata reshape, matches NCHW cat.
    return out.reshape(N, 3, H, W)


def _reference(z, vnorm, unorm, h, w, ch, cw, fh, fw):
    x = z * (0.5 * h * (vnorm + 1.0) - ch) / fh
    y = z * (0.5 * w * (unorm + 1.0) - cw) / fw
    return jnp.concatenate((x, y, z), axis=1)


if __name__ == "__main__":
    key = jax.random.PRNGKey(0)
    k1, k2, k3 = jax.random.split(key, 3)

    N, H, W = 2, 16, 16
    z = jax.random.uniform(k1, (N, 1, H, W), dtype=jnp.float32) * 10.0 + 0.5
    vnorm = jax.random.uniform(k2, (N, 1, H, W), dtype=jnp.float32) * 2.0 - 1.0
    unorm = jax.random.uniform(k3, (N, 1, H, W), dtype=jnp.float32) * 2.0 - 1.0

    # camera-like scalars (intrinsics): image size, principal point, focal length
    h_s, w_s = float(H), float(W)
    ch_s, cw_s = H / 2.0, W / 2.0
    fh_s, fw_s = 20.0, 20.0

    out = geometry_feature(z, vnorm, unorm, h_s, w_s, ch_s, cw_s, fh_s, fw_s)
    out = jax.block_until_ready(out)

    ref = _reference(z, vnorm, unorm, h_s, w_s, ch_s, cw_s, fh_s, fw_s)
    assert out.shape == (N, 3, H, W)
    assert jnp.allclose(out, ref, atol=1e-5, rtol=1e-5), "mismatch vs reference"

    print("KERNEL_OK")
</pallas_src>

<mosaic_0001>
module attributes {stable_mosaic.version = 11 : i64} {
  func.func @kernel(%arg0: i32, %arg1: i32, %arg2: memref<2x256xf32, #tpu.memory_space<vmem>>, %arg3: memref<2x256xf32, #tpu.memory_space<vmem>>, %arg4: memref<2x256xf32, #tpu.memory_space<vmem>>, %arg5: memref<2x3x256xf32, #tpu.memory_space<vmem>>) attributes {dimension_semantics = [#tpu.dimension_semantics<parallel>, #tpu.dimension_semantics<parallel>], iteration_bounds = array<i64: 1, 1>, scalar_prefetch = 0 : i64, scratch_operands = 0 : i64, tpu.core_type = #tpu.core_type<tc>, window_params = [{transform_indices = @transform_0, window_bounds = array<i64: 2, 256>}, {transform_indices = @transform_1, window_bounds = array<i64: 2, 256>}, {transform_indices = @transform_2, window_bounds = array<i64: 2, 256>}, {transform_indices = @transform_3, window_bounds = array<i64: 2, 3, 256>}]} {
    %c0 = arith.constant 0 : index
    %c0_0 = arith.constant 0 : index
    %0 = vector.load %arg2[%c0, %c0_0] : memref<2x256xf32, #tpu.memory_space<vmem>>, vector<2x256xf32>
    %c0_1 = arith.constant 0 : index
    %c0_2 = arith.constant 0 : index
    %1 = vector.load %arg3[%c0_1, %c0_2] : memref<2x256xf32, #tpu.memory_space<vmem>>, vector<2x256xf32>
    %cst = arith.constant 4.000000e-01 : f32
    %2 = vector.broadcast %cst : f32 to vector<2x256xf32>
    %3 = arith.mulf %1, %2 : vector<2x256xf32>
    %cst_3 = arith.constant 0.000000e+00 : f32
    %4 = vector.broadcast %cst_3 : f32 to vector<2x256xf32>
    %5 = arith.addf %3, %4 : vector<2x256xf32>
    %6 = arith.mulf %0, %5 : vector<2x256xf32>
    %c0_4 = arith.constant 0 : index
    %c0_5 = arith.constant 0 : index
    %c0_6 = arith.constant 0 : index
    %7 = vector.load %arg5[%c0_4, %c0_5, %c0_6] : memref<2x3x256xf32, #tpu.memory_space<vmem>>, vector<2x1x256xf32>
    %8 = vector.shape_cast %7 : vector<2x1x256xf32> to vector<2x256xf32>
    %9 = vector.shape_cast %6 : vector<2x256xf32> to vector<2x1x256xf32>
    tpu.vector_store %arg5[%c0_4, %c0_5, %c0_6], %9 {strides = array<i32>} : memref<2x3x256xf32, #tpu.memory_space<vmem>>, vector<2x1x256xf32>,
    %c0_7 = arith.constant 0 : index
    %c0_8 = arith.constant 0 : index
    %10 = vector.load %arg4[%c0_7, %c0_8] : memref<2x256xf32, #tpu.memory_space<vmem>>, vector<2x256xf32>
    %cst_9 = arith.constant 4.000000e-01 : f32
    %11 = vector.broadcast %cst_9 : f32 to vector<2x256xf32>
    %12 = arith.mulf %10, %11 : vector<2x256xf32>
    %cst_10 = arith.constant 0.000000e+00 : f32
    %13 = vector.broadcast %cst_10 : f32 to vector<2x256xf32>
    %14 = arith.addf %12, %13 : vector<2x256xf32>
    %15 = arith.mulf %0, %14 : vector<2x256xf32>
    %c0_11 = arith.constant 0 : index
    %c1 = arith.constant 1 : index
    %c0_12 = arith.constant 0 : index
    %16 = vector.load %arg5[%c0_11, %c1, %c0_12] : memref<2x3x256xf32, #tpu.memory_space<vmem>>, vector<2x1x256xf32>
    %17 = vector.shape_cast %16 : vector<2x1x256xf32> to vector<2x256xf32>
    %18 = vector.shape_cast %15 : vector<2x256xf32> to vector<2x1x256xf32>
    tpu.vector_store %arg5[%c0_11, %c1, %c0_12], %18 {strides = array<i32>} : memref<2x3x256xf32, #tpu.memory_space<vmem>>, vector<2x1x256xf32>,
    %c0_13 = arith.constant 0 : index
    %c2 = arith.constant 2 : index
    %c0_14 = arith.constant 0 : index
    %19 = vector.load %arg5[%c0_13, %c2, %c0_14] : memref<2x3x256xf32, #tpu.memory_space<vmem>>, vector<2x1x256xf32>
    %20 = vector.shape_cast %19 : vector<2x1x256xf32> to vector<2x256xf32>
    %21 = vector.shape_cast %0 : vector<2x256xf32> to vector<2x1x256xf32>
    tpu.vector_store %arg5[%c0_13, %c2, %c0_14], %21 {strides = array<i32>} : memref<2x3x256xf32, #tpu.memory_space<vmem>>, vector<2x1x256xf32>,
    return
  }
  func.func @transform_0(%arg0: i32, %arg1: i32) -> (i32, i32) {
    %c0_i32 = arith.constant 0 : i32
    return %arg0, %arg1 : i32, i32
  }
  func.func @transform_1(%arg0: i32, %arg1: i32) -> (i32, i32) {
    %c0_i32 = arith.constant 0 : i32
    return %arg0, %arg1 : i32, i32
  }
  func.func @transform_2(%arg0: i32, %arg1: i32) -> (i32, i32) {
    %c0_i32 = arith.constant 0 : i32
    return %arg0, %arg1 : i32, i32
  }
  func.func @transform_3(%arg0: i32, %arg1: i32) -> (i32, i32, i32) {
    %c0_i32 = arith.constant 0 : i32
    %c0_i32_0 = arith.constant 0 : i32
    return %arg0, %c0_i32, %arg1 : i32, i32, i32
  }
}

</mosaic_0001>

<llo_original>
// kernel: tpu_custom_call.1
$region0: #{tpu_custom_call.1}
  #allocation0 [shape = 'u32[]', space=smem, size = 0x4, offset = 0x4, fixed_abs, tag = 'smem constant byte address 0x4 - core index']
  #allocation1 [shape = 'u32[144,128]{1,0:T(1,128)}', space=vmem, size = 0x12000, scoped, tag = 'internal scratch']
  %s0 = inlined_call_operand.hbm [shape: f32[2,256], index: 0, kind: input, shape index: {}]
  %s1 = inlined_call_operand.hbm [shape: f32[2,256], index: 1, kind: input, shape index: {}]
  %s2 = inlined_call_operand.vmem [shape: f32[2,256], index: 2, kind: input, shape index: {}]
  %s3 = inlined_call_operand.vmem [shape: f32[2,3,256], index: 3, kind: output, shape index: {}]
  %s4 = sld [smem:[#allocation0]]
  $region30: #{tpu_custom_call.1} parent=0
    _
  %s6 = ssub.s32 1, %s4
  %s7 = scalar_select 0, %s6, %s4
  $region1: #{tpu_custom_call.1} parent=0
    #allocation2 [shape = 'u8[2048]{0}', space=vmem, size = 0x800, scoped, tag = 'input window, operand 0, single buffered']
    #allocation3 [shape = 's32[1]{0}', space=sflag, size = 0x4, scoped, tag = 'scoped memory for tpu_custom_call.1']
    #allocation4 [shape = 'u8[2048]{0}', space=vmem, size = 0x800, scoped, tag = 'input window, operand 1, single buffered']
    #allocation5 [shape = 's32[1]{0}', space=sflag, size = 0x4, scoped, tag = 'scoped memory for tpu_custom_call.1']
    %8 = vsyncpa [#allocation3], 0
    %9 = vsyncpa [#allocation5], 0
    // Predicated region
    $region2: #{tpu_custom_call.1} parent=1 // pred_check
      _
    $region3: #{tpu_custom_call.1} parent=1 // pred_check_branch
      %11 = sbr.rel (0) target = $region5
    $region4: #{tpu_custom_call.1} parent=1 // pred_region
      %s13 = ssub.s32 64, 64
      %14 = vsyncadd [#allocation3], %s13
      %s16 = sshll.u32 [#allocation2], 4
      %s17 = int_to_ptr.vmem [resolvable:$true] %s16
      %19 = dma.hbm_to_vmem [thread:$0]  %s0, 64, %s17, [#allocation3]
    $region5: #{tpu_custom_call.1} parent=1 // pred_fallthru
      _
    // Predicated region
    $region6: #{tpu_custom_call.1} parent=1 // pred_check
      _
    $region7: #{tpu_custom_call.1} parent=1 // pred_check_branch
      %21 = sbr.rel (0) target = $region9
    $region8: #{tpu_custom_call.1} parent=1 // pred_region
      %s23 = ssub.s32 64, 64
      %24 = vsyncadd [#allocation5], %s23
      %s26 = sshll.u32 [#allocation4], 4
      %s27 = int_to_ptr.vmem [resolvable:$true] %s26
      %29 = dma.hbm_to_vmem [thread:$0]  %s1, 64, %s27, [#allocation5]
    $region9: #{tpu_custom_call.1} parent=1 // pred_fallthru
      _
    // Predicated region
    $region10: #{tpu_custom_call.1} parent=1 // pred_check
      _
    $region11: #{tpu_custom_call.1} parent=1 // pred_check_branch
      %31 = sbr.rel (0) target = $region13
    $region12: #{tpu_custom_call.1} parent=1 // pred_region
      _
    $region13: #{tpu_custom_call.1} parent=1 // pred_fallthru
      _
    // Predicated region
    $region14: #{tpu_custom_call.1} parent=1 // pred_check
      _
    $region15: #{tpu_custom_call.1} parent=1 // pred_check_branch
      %33 = sbr.rel (0) target = $region17
    $region16: #{tpu_custom_call.1} parent=1 // pred_region
      %34 = dma.done [#allocation3], 64
    $region17: #{tpu_custom_call.1} parent=1 // pred_fallthru
      _
    // Predicated region
    $region18: #{tpu_custom_call.1} parent=1 // pred_check
      _
    $region19: #{tpu_custom_call.1} parent=1 // pred_check_branch
      %36 = sbr.rel (0) target = $region21
    $region20: #{tpu_custom_call.1} parent=1 // pred_region
      %37 = dma.done [#allocation5], 64
    $region21: #{tpu_custom_call.1} parent=1 // pred_fallthru
      _
    %v38 = vld [vmem:[#allocation2] sm:$0xf]
    %v39 = vld [vmem:[#allocation4] sm:$0xf]
    %v40 = vmul.f32 %v39, 0.4
    %v41 = vadd.f32 %v40, 0.0
    %v42 = vmul.f32 %v38, %v41
    %v45 = vunpack.c.l.s4 1966171168
    %v46 = vunpack.c.0.s8 %v45
    %v47 = vlaneseq
    %v48 = vshrl.u32 %v47, 7
    %v49 = vsub.s32 %v46, %v48
    %v50 = vrot.slane %v42, %v49
    %v51 = vcombine.high %v50, %v50
    %v54 = vlaneseq
    %vm55 = vcmp.ge.s32.totalorder %v54, 0
    %vm56 = vcmp.lt.s32.totalorder %v54, 256
    %vm57 = vmand %vm55, %vm56
    %58 = vst.msk [vmem:[%s3] ss:$4 sm:$0x3] %vm57, %v50
    %s59 = scalar_lea.vmem %s3, 8
    %60 = vst.msk [vmem:[%s59] ss:$4 sm:$0x3] %vm57, %v51
    %v61 = vld [vmem:[%s2] sm:$0xf]
    %v62 = vmul.f32 %v61, 0.4
    %v63 = vadd.f32 %v62, 0.0
    %v64 = vmul.f32 %v38, %v63
    %v67 = vunpack.c.l.s4 1966171168
    %v68 = vunpack.c.0.s8 %v67
    %v69 = vlaneseq
    %v70 = vshrl.u32 %v69, 7
    %v71 = vsub.s32 %v68, %v70
    %v72 = vrot.slane %v64, %v71
    %v73 = vcombine.high %v72, %v72
    %s76 = scalar_lea.vmem %s3, 1
    %77 = vst.msk [vmem:[%s76] ss:$4 sm:$0x3] %vm57, %v72
    %s78 = scalar_lea.vmem %s3, 9
    %79 = vst.msk [vmem:[%s78] ss:$4 sm:$0x3] %vm57, %v73
    %v82 = vunpack.c.l.s4 1966171168
    %v83 = vunpack.c.0.s8 %v82
    %v84 = vlaneseq
    %v85 = vshrl.u32 %v84, 7
    %v86 = vsub.s32 %v83, %v85
    %v87 = vrot.slane %v38, %v86
    %v88 = vcombine.high %v87, %v87
    %s91 = scalar_lea.vmem %s3, 2
    %92 = vst.msk [vmem:[%s91] ss:$4 sm:$0x3] %vm57, %v87
    %s93 = scalar_lea.vmem %s3, 10
    %94 = vst.msk [vmem:[%s93] ss:$4 sm:$0x3] %vm57, %v88
    // Predicated region
    $region22: #{tpu_custom_call.1} parent=1 // pred_check
      _
    $region23: #{tpu_custom_call.1} parent=1 // pred_check_branch
      %96 = sbr.rel (0) target = $region25
    $region24: #{tpu_custom_call.1} parent=1 // pred_region
      _
    $region25: #{tpu_custom_call.1} parent=1 // pred_fallthru
      _
    // Predicated region
    $region26: #{tpu_custom_call.1} parent=1 // pred_check
      _
    $region27: #{tpu_custom_call.1} parent=1 // pred_check_branch
      %98 = sbr.rel (0) target = $region29
    $region28: #{tpu_custom_call.1} parent=1 // pred_region
      _
    $region29: #{tpu_custom_call.1} parent=1 // pred_fallthru
      _
    %99 = vsyncpa [#allocation3], 1
    %100 = vsyncpa [#allocation5], 1

</llo_original>
